<compile_context>
chip_gen: v5e
topology: v5e:2x2
jax: 0.10.0
libtpu: 0.0.40
codegen_flags: <defaults>
</compile_context>

<pallas_src>
import functools

import jax
import jax.numpy as jnp
from jax.experimental import pallas as pl
from jax.experimental.pallas import tpu as pltpu


def _round_up(x, m):
    return ((x + m - 1) // m) * m


def _int_pow(x, n):
    """x ** n for a positive Python int n via O(log n) multiplies (VPU only, no EUP)."""
    result = None
    base = x
    while n > 0:
        if n & 1:
            result = base if result is None else result * base
        n >>= 1
        if n > 0:
            base = base * base
    return result


def _cyclical_focal_kernel(x_ref, tgt_ref, eta_ref, out_ref, *,
                           b_true, one_minus_eps, eps_over_c,
                           gamma_pos, gamma_neg, gamma_hc):
    i = pl.program_id(0)

    x = x_ref[...].astype(jnp.float32)        # (tile_b, C) logits
    tgt = tgt_ref[...]                        # (tile_b, 1) int32 class ids
    eta = eta_ref[0, 0]                       # scalar cyclical factor
    one_m_eta = 1.0 - eta

    tb, c = x.shape
    col = jax.lax.broadcasted_iota(jnp.int32, (tb, c), 1)
    is_tgt = col == tgt                       # one-hot (scatter_ equivalent)

    # --- log-softmax along classes; exp(z) reused for the probabilities ---
    m = jnp.max(x, axis=-1, keepdims=True)
    z = x - m
    e = jnp.exp(z)
    s = jnp.sum(e, axis=-1, keepdims=True)
    log_preds = z - jnp.log(s)
    p = e * pl.reciprocal(s, approx=False)    # exact reciprocal: feeds the focal weights

    # --- focal weight factors, specialized at trace time on the Python-float gammas ---
    def _pow(base_fn, log_fn, g):
        # base**g. None means "identically 1"; positive-integer g avoids exp/log.
        if g == 0.0:
            return None
        if float(g).is_integer() and g > 0:
            return _int_pow(base_fn(), int(g))
        return jnp.exp(g * log_fn())

    w_neg = _pow(lambda: p, lambda: log_preds, gamma_neg)             # p**g_neg (non-target cols)
    w_pos = _pow(lambda: 1.0 - p,
                 lambda: jnp.log(jnp.maximum(1.0 - p, 1e-30)),
                 gamma_pos)                                           # (1-p)**g_pos (target col)
    w_hc = _pow(lambda: 1.0 + p, lambda: jnp.log(1.0 + p), gamma_hc)  # (1+p)**g_hc (target col)

    if w_neg is None:
        blend_neg = one_m_eta + eta
    else:
        blend_neg = one_m_eta * w_neg + eta
    if w_pos is None and w_hc is None:
        blend_tgt = one_m_eta + eta
    else:
        a = one_m_eta * w_pos if w_pos is not None else one_m_eta
        b = eta * w_hc if w_hc is not None else eta
        blend_tgt = a + b

    weighted = log_preds * jnp.where(is_tgt, blend_tgt, blend_neg)

    # --- label smoothing folded algebraically: loss = (1-eps)*w@tgt + (eps/C)*sum_c w ---
    s_tgt = jnp.sum(jnp.where(is_tgt, weighted, 0.0), axis=-1, keepdims=True)
    if eps_over_c > 0.0:
        s_all = jnp.sum(weighted, axis=-1, keepdims=True)
        loss_row = -(one_minus_eps * s_tgt + eps_over_c * s_all)
    else:
        loss_row = -s_tgt

    # Mask batch rows past the true batch size (the edge block reads out of bounds).
    row = jax.lax.broadcasted_iota(jnp.int32, (tb, 1), 0) + i * tb
    loss_row = jnp.where(row < b_true, loss_row, 0.0)

    # Lane-dense, unmasked store of this tile's partial sum (whole 8x128 slab).
    out_ref[...] = jnp.full(out_ref.shape, jnp.sum(loss_row), dtype=jnp.float32)


def cyclical_focal_loss(inputs, target, epoch, *,
                        gamma_pos=0.0, gamma_neg=4.0, gamma_hc=0.0,
                        eps=0.1, reduction='mean', epochs=250, factor=2):
    """inputs: (B, C) float; target: (B,) int (or (B, C) one-hot); epoch: Python int."""
    if target.ndim > 1:
        target = jnp.argmax(target, axis=1)

    B, C = inputs.shape

    # eta schedule (Python scalar glue, same branch logic as the PyTorch module).
    if factor * epoch < epochs:
        eta = 1.0 - factor * epoch / (epochs - 1)
    else:
        eta = (factor * epoch / (epochs - 1) - 1.0) / (factor - 1.0)
    eta_arr = jnp.full((1, 1), eta, dtype=jnp.float32)

    tgt = target.astype(jnp.int32).reshape(B, 1)

    # --- tile-size selection from an explicit VMEM budget (no HBM padding of logits) ---
    itemsize = jnp.dtype(inputs.dtype).itemsize
    align = max(8, 32 // itemsize)               # 8 for f32, 16 for bf16 sublane packing
    c_lanes = _round_up(C, 128)                  # physical lanes per row in VMEM
    # double-buffered logits + double-buffered 128-lane-padded target block
    # + ~10 live full-tile f32 temporaries (x, e, p, log_preds, weights, masks, ...)
    bytes_per_row = c_lanes * (2 * itemsize + 10 * 4) + 2 * 128 * 4
    budget = 40 << 20                            # keeps the total well inside v7x's 64 MiB
    tile_b = (budget // bytes_per_row // align) * align
    tile_b = max(align, min(2048, tile_b))
    if B >= 2 * align:                           # >=2 grid tiles so both v7x TCs get work
        tile_b = min(tile_b, _round_up(pl.cdiv(B, 2), align))
    tile_b = min(tile_b, _round_up(B, align))
    if B < align:                                # tiny batch: single full-extent block
        tile_b = B
    num_tiles = pl.cdiv(B, tile_b)

    footprint = tile_b * bytes_per_row + 2 * 8 * 128 * 4
    vmem_limit = int(min(100 << 20, max(2 * footprint, 16 << 20)))

    kernel = functools.partial(
        _cyclical_focal_kernel,
        b_true=int(B),
        one_minus_eps=float(1.0 - eps),
        eps_over_c=float(eps) / float(C),
        gamma_pos=float(gamma_pos), gamma_neg=float(gamma_neg),
        gamma_hc=float(gamma_hc),
    )

    cost = pl.CostEstimate(
        flops=25 * B * c_lanes,
        transcendentals=2 * B * c_lanes,
        bytes_accessed=B * C * itemsize + B * 4 + num_tiles * 8 * 128 * 4,
    )

    out = pl.pallas_call(
        kernel,
        out_shape=jax.ShapeDtypeStruct((8 * num_tiles, 128), jnp.float32),
        grid=(num_tiles,),
        in_specs=[
            pl.BlockSpec((tile_b, C), lambda i: (i, 0)),   # logits tile (full class dim)
            pl.BlockSpec((tile_b, 1), lambda i: (i, 0)),   # target ids tile
            pl.BlockSpec(memory_space=pltpu.SMEM),         # eta scalar
        ],
        out_specs=pl.BlockSpec((8, 128), lambda i: (i, 0)),  # per-tile partial slab
        compiler_params=pltpu.CompilerParams(
            dimension_semantics=("parallel",),
            vmem_limit_bytes=vmem_limit,
        ),
        cost_estimate=cost,
    )(inputs, tgt, eta_arr)

    partials = out.reshape(num_tiles, 8, 128)[:, 0, 0]     # one partial per batch tile
    total = jnp.sum(partials)
    if reduction == 'mean':
        return total / jnp.float32(B)
    if reduction == 'sum':
        return total
    # TODO(synk): reduction='none' (per-sample vector) needs a per-row output layout.
    raise NotImplementedError(f"reduction={reduction!r}")


def _reference(inputs, target, epoch, *, gamma_pos=0.0, gamma_neg=4.0,
               gamma_hc=0.0, eps=0.1, epochs=250, factor=2):
    # plain-JAX reference of the PyTorch forward (for sanity check)
    B, C = inputs.shape
    log_preds = jax.nn.log_softmax(inputs.astype(jnp.float32), axis=1)
    targets = jax.nn.one_hot(target, C, dtype=jnp.float32)
    if factor * epoch < epochs:
        eta = 1.0 - factor * epoch / (epochs - 1)
    else:
        eta = (factor * epoch / (epochs - 1) - 1.0) / (factor - 1.0)
    anti = 1.0 - targets
    xs_pos = jnp.exp(log_preds) * targets
    xs_neg = (1.0 - jnp.exp(log_preds)) * anti
    asym_w = jnp.power(1.0 - xs_pos - xs_neg, gamma_pos * targets + gamma_neg * anti)
    pos_w = jnp.power(1.0 + xs_pos, gamma_hc * targets)
    lp = log_preds * ((1.0 - eta) * asym_w + eta * pos_w)
    tc = targets * (1.0 - eps) + eps / C if eps > 0 else targets
    return jnp.mean(jnp.sum(-tc * lp, axis=-1))


if __name__ == "__main__":
    key = jax.random.PRNGKey(0)
    k1, k2, k3, k4 = jax.random.split(key, 4)

    # Case 1: module-sized example (batch=8, classes=32) with default hyperparameters.
    B, C = 8, 32
    inputs = jax.random.normal(k1, (B, C), dtype=jnp.float32)
    target = jax.random.randint(k2, (B,), 0, C, dtype=jnp.int32)
    epoch = 10

    loss = cyclical_focal_loss(inputs, target, epoch)
    jax.block_until_ready(loss)
    ref = _reference(inputs, target, epoch)
    assert jnp.allclose(loss, ref, atol=1e-5, rtol=1e-4), (loss, ref)

    # Case 2: ragged batch (exercises the partial edge block + row mask), late-epoch eta,
    # and non-default gammas exercising the non-integer / integer specialization paths.
    B2, C2 = 13, 40
    inputs2 = jax.random.normal(k3, (B2, C2), dtype=jnp.float32)
    target2 = jax.random.randint(k4, (B2,), 0, C2, dtype=jnp.int32)
    epoch2 = 200

    loss2 = cyclical_focal_loss(inputs2, target2, epoch2)
    jax.block_until_ready(loss2)
    ref2 = _reference(inputs2, target2, epoch2)
    assert jnp.allclose(loss2, ref2, atol=1e-5, rtol=1e-4), (loss2, ref2)

    loss3 = cyclical_focal_loss(inputs2, target2, epoch2,
                                gamma_pos=1.0, gamma_neg=2.5, gamma_hc=2.0)
    jax.block_until_ready(loss3)
    ref3 = _reference(inputs2, target2, epoch2,
                      gamma_pos=1.0, gamma_neg=2.5, gamma_hc=2.0)
    assert jnp.allclose(loss3, ref3, atol=1e-5, rtol=1e-4), (loss3, ref3)

    print("KERNEL_OK")
</pallas_src>

<mosaic_0001>
module attributes {stable_mosaic.version = 11 : i64} {
  func.func @_cyclical_focal_kernel(%arg0: i32, %arg1: memref<8x32xf32, #tpu.memory_space<vmem>>, %arg2: memref<8x1xi32, #tpu.memory_space<vmem>>, %arg3: memref<1x1xf32, #tpu.memory_space<smem>>, %arg4: memref<8x128xf32, #tpu.memory_space<vmem>>) attributes {dimension_semantics = [#tpu.dimension_semantics<parallel>], iteration_bounds = array<i64: 1>, scalar_prefetch = 0 : i64, scratch_operands = 0 : i64, tpu.core_type = #tpu.core_type<tc>, window_params = [{transform_indices = @transform_0, window_bounds = array<i64: 8, 32>}, {transform_indices = @transform_1, window_bounds = array<i64: 8, 1>}, {transform_indices = @transform_2, window_bounds = array<i64: 1, 1>}, {transform_indices = @transform_3, window_bounds = array<i64: 8, 128>}]} {
    %c0 = arith.constant 0 : index
    %c0_0 = arith.constant 0 : index
    %0 = vector.load %arg1[%c0, %c0_0] : memref<8x32xf32, #tpu.memory_space<vmem>>, vector<8x32xf32>
    %c0_1 = arith.constant 0 : index
    %c0_2 = arith.constant 0 : index
    %1 = vector.load %arg2[%c0_1, %c0_2] : memref<8x1xi32, #tpu.memory_space<vmem>>, vector<8x1xi32>
    %c0_3 = arith.constant 0 : index
    %c0_4 = arith.constant 0 : index
    %2 = memref.load %arg3[%c0_3, %c0_4] : memref<1x1xf32, #tpu.memory_space<smem>>
    %cst = arith.constant 1.000000e+00 : f32
    %3 = arith.subf %cst, %2 : f32
    %4 = tpu.iota {dimensions = array<i32: 1>} : vector<8x32xi32>
    %5 = vector.broadcast %1 : vector<8x1xi32> to vector<8x32xi32>
    %6 = arith.cmpi eq, %4, %5 : vector<8x32xi32>
    %cst_5 = arith.constant dense<0xFF800000> : vector<8xf32>
    %7 = vector.multi_reduction <maximumf>, %0, %cst_5 [1] : vector<8x32xf32> to vector<8xf32>
    %8 = vector.shape_cast %7 : vector<8xf32> to vector<8x1xf32>
    %9 = vector.broadcast %8 : vector<8x1xf32> to vector<8x32xf32>
    %10 = arith.subf %0, %9 : vector<8x32xf32>
    %11 = math.exp %10 : vector<8x32xf32>
    %cst_6 = arith.constant dense<0.000000e+00> : vector<8xf32>
    %12 = vector.multi_reduction <add>, %11, %cst_6 [1] : vector<8x32xf32> to vector<8xf32>
    %13 = vector.shape_cast %12 : vector<8xf32> to vector<8x1xf32>
    %14 = math.log %13 : vector<8x1xf32>
    %15 = vector.broadcast %14 : vector<8x1xf32> to vector<8x32xf32>
    %16 = arith.subf %10, %15 : vector<8x32xf32>
    %17 = tpu.reciprocal %13 : vector<8x1xf32> -> vector<8x1xf32>
    %18 = vector.broadcast %17 : vector<8x1xf32> to vector<8x32xf32>
    %19 = arith.mulf %11, %18 : vector<8x32xf32>
    %20 = arith.mulf %19, %19 : vector<8x32xf32>
    %21 = arith.mulf %20, %20 : vector<8x32xf32>
    %22 = vector.broadcast %3 : f32 to vector<8x32xf32>
    %23 = arith.mulf %22, %21 : vector<8x32xf32>
    %24 = vector.broadcast %2 : f32 to vector<8x32xf32>
    %25 = arith.addf %23, %24 : vector<8x32xf32>
    %26 = arith.addf %3, %2 : f32
    %27 = vector.broadcast %26 : f32 to vector<8x32xf32>
    %28 = arith.select %6, %27, %25 : vector<8x32xi1>, vector<8x32xf32>
    %29 = arith.mulf %16, %28 : vector<8x32xf32>
    %cst_7 = arith.constant 0.000000e+00 : f32
    %30 = vector.broadcast %cst_7 : f32 to vector<8x32xf32>
    %31 = arith.select %6, %29, %30 : vector<8x32xi1>, vector<8x32xf32>
    %cst_8 = arith.constant dense<0.000000e+00> : vector<8xf32>
    %32 = vector.multi_reduction <add>, %31, %cst_8 [1] : vector<8x32xf32> to vector<8xf32>
    %33 = vector.shape_cast %32 : vector<8xf32> to vector<8x1xf32>
    %cst_9 = arith.constant dense<0.000000e+00> : vector<8xf32>
    %34 = vector.multi_reduction <add>, %29, %cst_9 [1] : vector<8x32xf32> to vector<8xf32>
    %35 = vector.shape_cast %34 : vector<8xf32> to vector<8x1xf32>
    %cst_10 = arith.constant 0.899999976 : f32
    %36 = vector.broadcast %cst_10 : f32 to vector<8x1xf32>
    %37 = arith.mulf %36, %33 : vector<8x1xf32>
    %cst_11 = arith.constant 3.125000e-03 : f32
    %38 = vector.broadcast %cst_11 : f32 to vector<8x1xf32>
    %39 = arith.mulf %38, %35 : vector<8x1xf32>
    %40 = arith.addf %37, %39 : vector<8x1xf32>
    %cst_12 = arith.constant 0.000000e+00 : f32
    %41 = vector.broadcast %cst_12 : f32 to vector<8x1xf32>
    %42 = arith.subf %41, %40 : vector<8x1xf32>
    %43 = tpu.iota {dimensions = array<i32: 0>} : vector<8x1xi32>
    %c8_i32 = arith.constant 8 : i32
    %44 = arith.muli %arg0, %c8_i32 : i32
    %45 = vector.broadcast %44 : i32 to vector<8x1xi32>
    %46 = arith.addi %43, %45 : vector<8x1xi32>
    %c8_i32_13 = arith.constant 8 : i32
    %47 = vector.broadcast %c8_i32_13 : i32 to vector<8x1xi32>
    %48 = arith.cmpi slt, %46, %47 : vector<8x1xi32>
    %cst_14 = arith.constant 0.000000e+00 : f32
    %49 = vector.broadcast %cst_14 : f32 to vector<8x1xf32>
    %50 = arith.select %48, %42, %49 : vector<8x1xi1>, vector<8x1xf32>
    %51 = vector.shape_cast %50 : vector<8x1xf32> to vector<1x8x1xf32>
    %cst_15 = arith.constant dense<0.000000e+00> : vector<1xf32>
    %52 = vector.multi_reduction <add>, %51, %cst_15 [1, 2] : vector<1x8x1xf32> to vector<1xf32>
    %53 = vector.shape_cast %52 : vector<1xf32> to vector<1x1x1xf32>
    %54 = vector.extract %53[0, 0, 0] : f32 from vector<1x1x1xf32>
    %55 = vector.broadcast %54 : f32 to vector<8x128xf32>
    %c0_16 = arith.constant 0 : index
    %c0_17 = arith.constant 0 : index
    %56 = vector.load %arg4[%c0_16, %c0_17] : memref<8x128xf32, #tpu.memory_space<vmem>>, vector<8x128xf32>
    tpu.vector_store %arg4[%c0_16, %c0_17], %55 {strides = array<i32>} : memref<8x128xf32, #tpu.memory_space<vmem>>, vector<8x128xf32>,
    return
  }
  func.func @transform_0(%arg0: i32) -> (i32, i32) {
    %c0_i32 = arith.constant 0 : i32
    %c0_i32_0 = arith.constant 0 : i32
    return %arg0, %c0_i32 : i32, i32
  }
  func.func @transform_1(%arg0: i32) -> (i32, i32) {
    %c0_i32 = arith.constant 0 : i32
    %c0_i32_0 = arith.constant 0 : i32
    return %arg0, %c0_i32 : i32, i32
  }
  func.func @transform_2(%arg0: i32) -> (i32, i32) {
    %c0_i32 = arith.constant 0 : i32
    %c0_i32_0 = arith.constant 0 : i32
    %c0_i32_1 = arith.constant 0 : i32
    return %c0_i32, %c0_i32_0 : i32, i32
  }
  func.func @transform_3(%arg0: i32) -> (i32, i32) {
    %c0_i32 = arith.constant 0 : i32
    %c0_i32_0 = arith.constant 0 : i32
    return %arg0, %c0_i32 : i32, i32
  }
}

</mosaic_0001>

<llo_original>
// kernel: tpu_custom_call.1
$region0: #{tpu_custom_call.1}
  #allocation0 [shape = 'u32[]', space=smem, size = 0x4, offset = 0x4, fixed_abs, tag = 'smem constant byte address 0x4 - core index']
  #allocation1 [shape = 'u32[72,128]{1,0:T(1,128)}', space=vmem, size = 0x9000, scoped, tag = 'internal scratch']
  #allocation2 [shape = 'f32[1,1]{1,0:T(1,128)S(6)}', space=smem, size = 0x200, scoped, tag = 'scoped memory for tpu_custom_call.1']
  %s0 = inlined_call_operand.vmem [shape: f32[8,32], index: 0, kind: input, shape index: {}]
  %s1 = inlined_call_operand.vmem [shape: s32[8,1], index: 1, kind: input, shape index: {}]
  %s2 = inlined_call_operand.<no memory space> [shape: f32[1,1], index: 2, kind: input, shape index: {}]
  %s3 = inlined_call_operand.hbm [shape: f32[8,128], index: 3, kind: output, shape index: {}]
  %s4 = sld [smem:[#allocation0]]
  $region22: #{tpu_custom_call.1} parent=0
    _
  %s6 = ssub.s32 1, %s4
  %s7 = scalar_select 0, %s6, %s4
  %8 = sst [smem:[#allocation2]] %s2
  $region1: #{tpu_custom_call.1} parent=0
    #allocation3 [shape = 'u8[4096]{0}', space=vmem, size = 0x1000, scoped, tag = 'output window, operand 0, single buffered']
    #allocation4 [shape = 's32[1]{0}', space=sflag, size = 0x4, scoped, tag = 'scoped memory for tpu_custom_call.1']
    %9 = vsyncpa [#allocation4], 0
    // Predicated region
    $region2: #{tpu_custom_call.1} parent=1 // pred_check
      _
    $region3: #{tpu_custom_call.1} parent=1 // pred_check_branch
      %11 = sbr.rel (0) target = $region5
    $region4: #{tpu_custom_call.1} parent=1 // pred_region
      _
    $region5: #{tpu_custom_call.1} parent=1 // pred_fallthru
      _
    // Predicated region
    $region6: #{tpu_custom_call.1} parent=1 // pred_check
      _
    $region7: #{tpu_custom_call.1} parent=1 // pred_check_branch
      %13 = sbr.rel (0) target = $region9
    $region8: #{tpu_custom_call.1} parent=1 // pred_region
      _
    $region9: #{tpu_custom_call.1} parent=1 // pred_fallthru
      _
    // Predicated region
    $region10: #{tpu_custom_call.1} parent=1 // pred_check
      _
    $region11: #{tpu_custom_call.1} parent=1 // pred_check_branch
      %15 = sbr.rel (0) target = $region13
    $region12: #{tpu_custom_call.1} parent=1 // pred_region
      _
    $region13: #{tpu_custom_call.1} parent=1 // pred_fallthru
      _
    %v16 = vld [vmem:[%s0] sm:$0xff]
    %v17 = vld [vmem:[%s1] sm:$0xff]
    %s18 = sld [smem:[#allocation2]]
    %s19 = ssub.f32 1.0, %s18
    %v20 = vlaneseq
    %v21 = vand.u32 %v20, 127
    %22 = vset.pattern.permute.xlu0 0
    %23 = vperm.xlu0 %22, %v17
    %v24 = vpop.permute.xlu0 %23
    %vm25 = vcmp.eq.s32.totalorder %v21, %v24
    %vm26 = vcmask 261120
    %v27 = vsel %vm26, %v16, -inf
    %28 = vmax.xlane.f32.xlu0 %v27
    %v29 = vpop.xlane.xlu0 %28
    %v30 = vsub.f32 %v16, %v29
    %v31 = vmul.f32 %v30, 1.442695
    %v32 = vpow.pop %v31
    %v33 = vsel %vm26, %v32, 0.0
    %34 = vadd.xlane.f32.xlu0 %v33
    %v35 = vpop.xlane.xlu0 %34
    %v36 = vlog2.pop %v35
    %v37 = vmul.f32 %v36, 0.6931472
    %v38 = vsub.f32 %v30, %v37
    %v39 = vrcp.pop %v35
    %v40 = vmul.f32 %v35, %v39
    %v41 = vsub.f32 1.0, %v40
    %v42 = vmul.f32 %v39, %v41
    %v43 = vadd.f32 %v39, %v42
    %vm44 = vweird.f32 %v35
    %vm45 = vweird.f32 %v39
    %vm46 = vmor %vm44, %vm45
    %v47 = vsel %vm46, %v39, %v43
    %v48 = vand.u32 2147483647, %v35
    %vm49 = vcmp.eq.f32.partialorder %v48, 8.507059e+37
    %v50 = vand.u32 %v35, 2147483648
    %v51 = vor.u32 1.1754944e-38, %v50
    %v52 = vsel %vm49, %v51, %v47
    %v53 = vmul.f32 %v32, %v52
    %v54 = vmul.f32 %v53, %v53
    %v55 = vmul.f32 %v54, %v54
    %v56 = vstv %s19
    %v57 = vmul.f32 %v56, %v55
    %v58 = vstv %s18
    %v59 = vadd.f32 %v57, %v58
    %s60 = sadd.f32 %s19, %s18
    %v61 = vstv %s60
    %v62 = vsel %vm25, %v61, %v59
    %v63 = vmul.f32 %v38, %v62
    %v64 = vsel %vm25, %v63, 0.0
    %v65 = vsel %vm26, %v64, 0.0
    %66 = vadd.xlane.f32.xlu0 %v65
    %v67 = vpop.xlane.xlu0 %66
    %v68 = vsel %vm26, %v63, 0.0
    %69 = vadd.xlane.f32.xlu0 %v68
    %v70 = vpop.xlane.xlu0 %69
    %v71 = vmul.f32 %v67, 0.9
    %v72 = vmul.f32 %v70, 0.003125
    %v73 = vadd.f32 %v71, %v72
    %v74 = vsub.f32 0.0, %v73
    %v75 = vlaneseq
    %v76 = vshrl.u32 %v75, 7
    %s77 = smul.u32 0, 8
    %v78 = vstv %s77
    %v79 = vadd.s32 %v76, %v78
    %vm80 = vcmp.lt.s32.totalorder %v79, 8
    %v81 = vsel %vm80, %v74, 0.0
    %vm82 = vcmask 7168
    %v83 = vsel %vm82, %v81, 0.0
    %84 = vadd.xlane.f32.xlu0 %v83
    %v85 = vpop.xlane.xlu0 %84
    %v86 = vrot.slane %v85, 4
    %v87 = vadd.f32 %v85, %v86
    %v88 = vrot.slane %v87, 2
    %v89 = vadd.f32 %v87, %v88
    %v90 = vrot.slane %v89, 1
    %v91 = vadd.f32 %v89, %v90
    %s92 = vtos %v91
    %v93 = vstv %s92
    %94 = vst [vmem:[#allocation3] sm:$0xff] %v93
    // Predicated region
    $region14: #{tpu_custom_call.1} parent=1 // pred_check
      _
    $region15: #{tpu_custom_call.1} parent=1 // pred_check_branch
      %96 = sbr.rel (0) target = $region17
    $region16: #{tpu_custom_call.1} parent=1 // pred_region
      %98 = vsyncadd [#allocation4], 0
      %s100 = sshll.u32 [#allocation3], 4
      %s101 = int_to_ptr.vmem [resolvable:$true] %s100
      %s102 = sshll.u32 %s3, 4
      %s103 = int_to_ptr.hbm [resolvable:$true] %s102
      %105 = dma.vmem_to_hbm [thread:$0]  %s101, 128, %s103, [#allocation4]
    $region17: #{tpu_custom_call.1} parent=1 // pred_fallthru
      _
    // Predicated region
    $region18: #{tpu_custom_call.1} parent=1 // pred_check
      _
    $region19: #{tpu_custom_call.1} parent=1 // pred_check_branch
      %107 = sbr.rel (0) target = $region21
    $region20: #{tpu_custom_call.1} parent=1 // pred_region
      %109 = dma.done [#allocation4], 128
    $region21: #{tpu_custom_call.1} parent=1 // pred_fallthru
      _
    %110 = vsyncpa [#allocation4], 1

</llo_original>
